<compile_context>
chip_gen: v7x
topology: tpu7x:2x2x1
jax: 0.10.0
libtpu: 0.0.40
codegen_flags: <defaults>
</compile_context>

<pallas_src>
import jax
import jax.numpy as jnp
from jax import lax
from jax.experimental import pallas as pl
from jax.experimental.pallas import tpu as pltpu


def _leaky(v, slope=0.2):
    # LeakyReLU(0.2): for 0 < slope < 1, max(x, slope*x) == leaky_relu(x)
    return jnp.maximum(v, slope * v)


def dgcn_kernel(x_ref, o1c_ref, tcv_ref, adj_ref, adjt_ref, ws_t_ref, bs_ref,
                wcox_ref, wd_t_ref, bd_ref, out_ref, loss_ref, stage_ref):
    f32 = jnp.float32
    B, N, C = x_ref.shape

    inv_n = jnp.float32(1.0 / N)
    half_over_n = jnp.float32(0.5 / N)

    # Call-invariant prep done once per call on the VPU (rides under MXU/DMA slack).
    adj_s = adj_ref[...] * inv_n           # static_adj / N        (static aggregation)
    adjt_p = adjt_ref[...] * half_over_n   # static_adj.T * 0.5/N  (dyn_adj average term)
    ws_t = ws_t_ref[...]                   # (C, C)      static_weight conv W.T
    bs = bs_ref[...]                       # (1, C)
    wco_x = wcox_ref[...]                  # (N, C)      feature half of conv_create_co_mat
    wd_t = wd_t_ref[...]                   # (C, C_out)  dynamic_weight conv W.T
    bd = bd_ref[...]                       # (1, C_out)

    # sigmoid(out1) once for the whole batch (column layout; row view derived per batch).
    o1s = jax.nn.sigmoid(o1c_ref[...])     # (B, N, 1)

    # ---- phase 1: per-batch static aggregation  h_b = leaky(static_adj @ x_b / N) ----
    for b in range(B):
        h_b = _leaky(jnp.dot(adj_s, x_ref[b], preferred_element_type=f32))     # (N, C)
        stage_ref[pl.ds(b * N, N), :] = h_b

    # ---- phase 2: static_weight GEMM batched over all B*N nodes (one MXU pass) ----
    out_static = _leaky(
        jnp.dot(stage_ref[...], ws_t, preferred_element_type=f32) + bs)        # (B*N, C)

    # ---- phase 3: per-batch dynamic graph, adjacency loss, dynamic aggregation ----
    loss_acc = jnp.zeros((1, 1), f32)
    for b in range(B):
        x2 = x_ref[b] + out_static[b * N:(b + 1) * N, :]                        # residual (N, C)

        # conv_create_co_mat: feature half here; connect_vec half (+bias) is tcv (wrapper).
        t_x = jnp.einsum('oc,sc->os', wco_x, x2, preferred_element_type=f32)    # (N, N)
        dyn = jax.nn.sigmoid(t_x + tcv_ref[b])                                  # dyn[o, s]

        # genAdj + 0.5*(. + static_adj), built directly transposed & pre-scaled by 1/N:
        #   m[a, c] = dyn_adj.T[a, c] / N = (d[a]*dyn[a,c]*d[c] + static_adj[c, a]) * 0.5/N
        # TODO(synk): genAdj source is not in the provided snippet; assumed ML-GCN
        #             gen_adj: adj' = (A @ D).T @ D with D = diag(rowsum(A) ** -0.5).
        d_col = lax.rsqrt(jnp.sum(dyn, axis=1, keepdims=True))                  # (N, 1)
        m = (d_col * half_over_n) * dyn * d_col.T + adjt_p                      # (N, N) = dyn_adj.T / N

        # dynamic_adj_loss: 1-row "matmul" kept off the MXU (VPU multiply + lane reduce),
        # accumulated across the batch in-kernel (no wrapper reduction launch).
        o1_col = o1s[b]                                                         # (N, 1)
        transformed = jnp.sum(m * o1_col.T, axis=1, keepdims=True)              # (N, 1) = out1 @ dyn_adj / N
        diff = o1_col - transformed
        loss_acc = loss_acc + jnp.sqrt(jnp.sum(diff * diff, keepdims=True))     # (1, 1)

        # dynamic aggregation  h2_b = leaky(dyn_adj.T/N @ x2); reuse the staging buffer.
        h2_b = _leaky(jnp.dot(m, x2, preferred_element_type=f32))               # (N, C)
        stage_ref[pl.ds(b * N, N), :] = h2_b

    # ---- phase 4: dynamic_weight GEMM batched over all B*N nodes + final LeakyReLU ----
    out_all = _leaky(
        jnp.dot(stage_ref[...], wd_t, preferred_element_type=f32) + bd)         # (B*N, C_out)
    for b in range(B):
        out_ref[b] = out_all[b * N:(b + 1) * N, :].astype(out_ref.dtype)

    loss_ref[...] = loss_acc


def prepare_params(static_adj, ws, bs, wco, bco, wd, bd):
    """One-time (setup) packing of the call-invariant parameters.

    All transposes / reshapes / weight splits live here, so the per-call wrapper
    launches essentially nothing but the pallas_call itself.
    """
    c_in = ws.shape[0]
    return dict(
        adj=static_adj,                    # (N, N)     raw; scaled by 1/N in-kernel
        adj_t=static_adj.T,                # (N, N)     raw; scaled by 0.5/N in-kernel
        ws_t=ws.T,                         # (C, C)
        bs_row=bs.reshape(1, -1),          # (1, C)
        wco_cv_t=wco[:, :c_in].T,          # (C, N)     connect_vec half (wrapper matmul)
        wco_x=wco[:, c_in:],               # (N, C)     feature half (kernel)
        bco_row=bco.reshape(1, -1),        # (1, N)
        wd_t=wd.T,                         # (C, C_out)
        bd_row=bd.reshape(1, -1),          # (1, C_out)
    )


@jax.jit
def dgcn_forward(x, connect_vec, out1, params):
    """x: (B, N, C) node-major (== torch x.transpose(1, 2)).

    Returns (out (B, C_out, N), dynamic_adj_loss scalar) like the PyTorch module.
    """
    B, N, C = x.shape
    c_out = params['wd_t'].shape[1]

    # Only genuinely per-batch prep stays in the wrapper (review-sanctioned): the
    # connect_vec half of conv_create_co_mat, plus two free trailing-unit bitcasts.
    tcv = (connect_vec @ params['wco_cv_t'] + params['bco_row'])[..., None]     # (B, N, 1)
    o1c = out1[..., None]                                                       # (B, N, 1)

    vmem = pl.BlockSpec(memory_space=pltpu.MemorySpace.VMEM)
    out_nc, loss11 = pl.pallas_call(
        dgcn_kernel,
        out_shape=(jax.ShapeDtypeStruct((B, N, c_out), jnp.float32),
                   jax.ShapeDtypeStruct((1, 1), jnp.float32)),
        in_specs=[vmem] * 10,
        out_specs=(vmem, vmem),
        scratch_shapes=[pltpu.VMEM((B * N, C), jnp.float32)],
        # For production sizes (C ~ 1024-2048) add:
        #   compiler_params=pltpu.CompilerParams(vmem_limit_bytes=...)
        # and cast MXU operands to bf16 (keep preferred_element_type=f32).
    )(x, o1c, tcv,
      params['adj'], params['adj_t'], params['ws_t'], params['bs_row'],
      params['wco_x'], params['wd_t'], params['bd_row'])

    # Back to the PyTorch (B, C_out, N) contract; a consumer accepting node-major
    # (B, N, C_out) can drop this transpose (lane-dense straight out of the kernel).
    out = jnp.transpose(out_nc, (0, 2, 1))
    return out, loss11[0, 0]


if __name__ == "__main__":
    B, C_in, C_out, N = 2, 32, 32, 8   # N == num_nodes (num_classes)

    key = jax.random.PRNGKey(0)
    ks = jax.random.split(key, 10)

    # inputs (x already in the post-`x.transpose(1,2)` node-major layout)
    x = jax.random.normal(ks[0], (B, N, C_in), jnp.float32)
    connect_vec = jax.random.normal(ks[1], (B, C_in), jnp.float32)
    out1 = jax.random.normal(ks[2], (B, N), jnp.float32)

    # fixed adjacency: CustomMatrix(adjList, needTranspose=True)
    adj_raw = jax.random.uniform(ks[3], (N, N), jnp.float32)
    static_adj = adj_raw.T

    # deterministic synthetic parameters (Conv1d kernel_size=1 weights squeezed to 2D)
    ws = jax.random.normal(ks[4], (C_in, C_in), jnp.float32) * 0.1       # static_weight conv
    bs = jax.random.normal(ks[5], (C_in,), jnp.float32) * 0.1
    wco = jax.random.normal(ks[6], (N, 2 * C_in), jnp.float32) * 0.1     # conv_create_co_mat
    bco = jax.random.normal(ks[7], (N,), jnp.float32) * 0.1
    wd = jax.random.normal(ks[8], (C_out, C_in), jnp.float32) * 0.1      # dynamic_weight conv
    bd = jax.random.normal(ks[9], (C_out,), jnp.float32) * 0.1

    params = prepare_params(static_adj, ws, bs, wco, bco, wd, bd)        # setup-time, once

    out, dynamic_adj_loss = dgcn_forward(x, connect_vec, out1, params)

    jax.block_until_ready((out, dynamic_adj_loss))
    assert out.shape == (B, C_out, N)
    assert dynamic_adj_loss.shape == ()
    print("KERNEL_OK")
</pallas_src>

<mosaic_0001>
module attributes {stable_mosaic.version = 11 : i64} {
  func.func @dgcn_kernel(%arg0: memref<2x8x32xf32, #tpu.memory_space<vmem>>, %arg1: memref<2x8x1xf32, #tpu.memory_space<vmem>>, %arg2: memref<2x8x1xf32, #tpu.memory_space<vmem>>, %arg3: memref<8x8xf32, #tpu.memory_space<vmem>>, %arg4: memref<8x8xf32, #tpu.memory_space<vmem>>, %arg5: memref<32x32xf32, #tpu.memory_space<vmem>>, %arg6: memref<1x32xf32, #tpu.memory_space<vmem>>, %arg7: memref<8x32xf32, #tpu.memory_space<vmem>>, %arg8: memref<32x32xf32, #tpu.memory_space<vmem>>, %arg9: memref<1x32xf32, #tpu.memory_space<vmem>>, %arg10: memref<2x8x32xf32, #tpu.memory_space<vmem>>, %arg11: memref<1x1xf32, #tpu.memory_space<vmem>>, %arg12: memref<16x32xf32, #tpu.memory_space<vmem>>) attributes {dimension_semantics = [], scalar_prefetch = 0 : i64, scratch_operands = 1 : i64, tpu.core_type = #tpu.core_type<tc>} {
    %c0 = arith.constant 0 : index
    %c0_0 = arith.constant 0 : index
    %0 = vector.load %arg3[%c0, %c0_0] : memref<8x8xf32, #tpu.memory_space<vmem>>, vector<8x8xf32>
    %cst = arith.constant 1.250000e-01 : f32
    %1 = vector.broadcast %cst : f32 to vector<8x8xf32>
    %2 = arith.mulf %0, %1 : vector<8x8xf32>
    %c0_1 = arith.constant 0 : index
    %c0_2 = arith.constant 0 : index
    %3 = vector.load %arg4[%c0_1, %c0_2] : memref<8x8xf32, #tpu.memory_space<vmem>>, vector<8x8xf32>
    %cst_3 = arith.constant 6.250000e-02 : f32
    %4 = vector.broadcast %cst_3 : f32 to vector<8x8xf32>
    %5 = arith.mulf %3, %4 : vector<8x8xf32>
    %c0_4 = arith.constant 0 : index
    %c0_5 = arith.constant 0 : index
    %6 = vector.load %arg5[%c0_4, %c0_5] : memref<32x32xf32, #tpu.memory_space<vmem>>, vector<32x32xf32>
    %c0_6 = arith.constant 0 : index
    %c0_7 = arith.constant 0 : index
    %7 = vector.load %arg6[%c0_6, %c0_7] : memref<1x32xf32, #tpu.memory_space<vmem>>, vector<1x32xf32>
    %c0_8 = arith.constant 0 : index
    %c0_9 = arith.constant 0 : index
    %8 = vector.load %arg7[%c0_8, %c0_9] : memref<8x32xf32, #tpu.memory_space<vmem>>, vector<8x32xf32>
    %c0_10 = arith.constant 0 : index
    %c0_11 = arith.constant 0 : index
    %9 = vector.load %arg8[%c0_10, %c0_11] : memref<32x32xf32, #tpu.memory_space<vmem>>, vector<32x32xf32>
    %c0_12 = arith.constant 0 : index
    %c0_13 = arith.constant 0 : index
    %10 = vector.load %arg9[%c0_12, %c0_13] : memref<1x32xf32, #tpu.memory_space<vmem>>, vector<1x32xf32>
    %c0_14 = arith.constant 0 : index
    %c0_15 = arith.constant 0 : index
    %c0_16 = arith.constant 0 : index
    %11 = vector.load %arg1[%c0_14, %c0_15, %c0_16] : memref<2x8x1xf32, #tpu.memory_space<vmem>>, vector<2x8x1xf32>
    %12 = arith.negf %11 : vector<2x8x1xf32>
    %13 = math.exp %12 : vector<2x8x1xf32>
    %cst_17 = arith.constant 1.000000e+00 : f32
    %14 = vector.broadcast %cst_17 : f32 to vector<2x8x1xf32>
    %15 = arith.addf %14, %13 : vector<2x8x1xf32>
    %16 = arith.divf %14, %15 : vector<2x8x1xf32>
    %c0_18 = arith.constant 0 : index
    %c0_19 = arith.constant 0 : index
    %c0_20 = arith.constant 0 : index
    %17 = vector.load %arg0[%c0_18, %c0_19, %c0_20] : memref<2x8x32xf32, #tpu.memory_space<vmem>>, vector<1x8x32xf32>
    %18 = vector.shape_cast %17 : vector<1x8x32xf32> to vector<8x32xf32>
    %cst_21 = arith.constant dense<0.000000e+00> : vector<8x32xf32>
    %19 = tpu.matmul %2, %18, %cst_21 {dimension_numbers = #tpu.dot_dimension_numbers<[1], [0], [0], [1], [0, 0, 1, 1], [], []>} : vector<8x8xf32>, vector<8x32xf32>, vector<8x32xf32> -> vector<8x32xf32>
    %cst_22 = arith.constant 2.000000e-01 : f32
    %20 = vector.broadcast %cst_22 : f32 to vector<8x32xf32>
    %21 = arith.mulf %20, %19 : vector<8x32xf32>
    %22 = arith.maximumf %19, %21 : vector<8x32xf32>
    %c0_23 = arith.constant 0 : index
    %c0_24 = arith.constant 0 : index
    %23 = vector.load %arg12[%c0_23, %c0_24] : memref<16x32xf32, #tpu.memory_space<vmem>>, vector<8x32xf32>
    tpu.vector_store %arg12[%c0_23, %c0_24], %22 {strides = array<i32>} : memref<16x32xf32, #tpu.memory_space<vmem>>, vector<8x32xf32>,
    %c1 = arith.constant 1 : index
    %c0_25 = arith.constant 0 : index
    %c0_26 = arith.constant 0 : index
    %24 = vector.load %arg0[%c1, %c0_25, %c0_26] : memref<2x8x32xf32, #tpu.memory_space<vmem>>, vector<1x8x32xf32>
    %25 = vector.shape_cast %24 : vector<1x8x32xf32> to vector<8x32xf32>
    %cst_27 = arith.constant dense<0.000000e+00> : vector<8x32xf32>
    %26 = tpu.matmul %2, %25, %cst_27 {dimension_numbers = #tpu.dot_dimension_numbers<[1], [0], [0], [1], [0, 0, 1, 1], [], []>} : vector<8x8xf32>, vector<8x32xf32>, vector<8x32xf32> -> vector<8x32xf32>
    %cst_28 = arith.constant 2.000000e-01 : f32
    %27 = vector.broadcast %cst_28 : f32 to vector<8x32xf32>
    %28 = arith.mulf %27, %26 : vector<8x32xf32>
    %29 = arith.maximumf %26, %28 : vector<8x32xf32>
    %c8 = arith.constant 8 : index
    %c0_29 = arith.constant 0 : index
    %30 = vector.load %arg12[%c8, %c0_29] : memref<16x32xf32, #tpu.memory_space<vmem>>, vector<8x32xf32>
    tpu.vector_store %arg12[%c8, %c0_29], %29 {strides = array<i32>} : memref<16x32xf32, #tpu.memory_space<vmem>>, vector<8x32xf32>,
    %c0_30 = arith.constant 0 : index
    %c0_31 = arith.constant 0 : index
    %31 = vector.load %arg12[%c0_30, %c0_31] : memref<16x32xf32, #tpu.memory_space<vmem>>, vector<16x32xf32>
    %cst_32 = arith.constant dense<0.000000e+00> : vector<16x32xf32>
    %32 = tpu.matmul %31, %6, %cst_32 {dimension_numbers = #tpu.dot_dimension_numbers<[1], [0], [0], [1], [0, 0, 1, 1], [], []>} : vector<16x32xf32>, vector<32x32xf32>, vector<16x32xf32> -> vector<16x32xf32>
    %33 = vector.broadcast %7 : vector<1x32xf32> to vector<16x32xf32>
    %34 = arith.addf %32, %33 : vector<16x32xf32>
    %cst_33 = arith.constant 2.000000e-01 : f32
    %35 = vector.broadcast %cst_33 : f32 to vector<16x32xf32>
    %36 = arith.mulf %35, %34 : vector<16x32xf32>
    %37 = arith.maximumf %34, %36 : vector<16x32xf32>
    %cst_34 = arith.constant 0.000000e+00 : f32
    %38 = vector.broadcast %cst_34 : f32 to vector<1x1xf32>
    %c0_35 = arith.constant 0 : index
    %c0_36 = arith.constant 0 : index
    %c0_37 = arith.constant 0 : index
    %39 = vector.load %arg0[%c0_35, %c0_36, %c0_37] : memref<2x8x32xf32, #tpu.memory_space<vmem>>, vector<1x8x32xf32>
    %40 = vector.shape_cast %39 : vector<1x8x32xf32> to vector<8x32xf32>
    %41 = vector.extract_strided_slice %37 {offsets = [0, 0], sizes = [8, 32], strides = [1, 1]} : vector<16x32xf32> to vector<8x32xf32>
    %42 = arith.addf %40, %41 : vector<8x32xf32>
    "tpu.trace_start"() <{level = 10 : i32, message = "oc,sc->os"}> : () -> ()
    %cst_38 = arith.constant dense<0.000000e+00> : vector<8x8xf32>
    %43 = tpu.matmul %8, %42, %cst_38 {dimension_numbers = #tpu.dot_dimension_numbers<[1], [1], [0], [0], [0, 0, 1, 0], [], []>} : vector<8x32xf32>, vector<8x32xf32>, vector<8x8xf32> -> vector<8x8xf32>
    "tpu.trace_stop"() : () -> ()
    %c0_39 = arith.constant 0 : index
    %c0_40 = arith.constant 0 : index
    %c0_41 = arith.constant 0 : index
    %44 = vector.load %arg2[%c0_39, %c0_40, %c0_41] : memref<2x8x1xf32, #tpu.memory_space<vmem>>, vector<1x8x1xf32>
    %45 = vector.shape_cast %44 : vector<1x8x1xf32> to vector<8x1xf32>
    %46 = vector.broadcast %45 : vector<8x1xf32> to vector<8x8xf32>
    %47 = arith.addf %43, %46 : vector<8x8xf32>
    %48 = arith.negf %47 : vector<8x8xf32>
    %49 = math.exp %48 : vector<8x8xf32>
    %cst_42 = arith.constant 1.000000e+00 : f32
    %50 = vector.broadcast %cst_42 : f32 to vector<8x8xf32>
    %51 = arith.addf %50, %49 : vector<8x8xf32>
    %52 = arith.divf %50, %51 : vector<8x8xf32>
    %cst_43 = arith.constant dense<0.000000e+00> : vector<8xf32>
    %53 = vector.multi_reduction <add>, %52, %cst_43 [1] : vector<8x8xf32> to vector<8xf32>
    %54 = vector.shape_cast %53 : vector<8xf32> to vector<8x1xf32>
    %55 = math.rsqrt %54 : vector<8x1xf32>
    %cst_44 = arith.constant 6.250000e-02 : f32
    %56 = vector.broadcast %cst_44 : f32 to vector<8x1xf32>
    %57 = arith.mulf %55, %56 : vector<8x1xf32>
    %58 = vector.broadcast %57 : vector<8x1xf32> to vector<8x8xf32>
    %59 = arith.mulf %58, %52 : vector<8x8xf32>
    %60 = tpu.transpose %55, [1, 0] : vector<8x1xf32> -> vector<1x8xf32>
    %61 = vector.broadcast %60 : vector<1x8xf32> to vector<8x8xf32>
    %62 = arith.mulf %59, %61 : vector<8x8xf32>
    %63 = arith.addf %62, %5 : vector<8x8xf32>
    %64 = vector.extract_strided_slice %16 {offsets = [0, 0, 0], sizes = [1, 8, 1], strides = [1, 1, 1]} : vector<2x8x1xf32> to vector<1x8x1xf32>
    %65 = vector.shape_cast %64 : vector<1x8x1xf32> to vector<8x1xf32>
    %66 = tpu.transpose %65, [1, 0] : vector<8x1xf32> -> vector<1x8xf32>
    %67 = vector.broadcast %66 : vector<1x8xf32> to vector<8x8xf32>
    %68 = arith.mulf %63, %67 : vector<8x8xf32>
    %cst_45 = arith.constant dense<0.000000e+00> : vector<8xf32>
    %69 = vector.multi_reduction <add>, %68, %cst_45 [1] : vector<8x8xf32> to vector<8xf32>
    %70 = vector.shape_cast %69 : vector<8xf32> to vector<8x1xf32>
    %71 = arith.subf %65, %70 : vector<8x1xf32>
    %72 = arith.mulf %71, %71 : vector<8x1xf32>
    %73 = vector.shape_cast %72 : vector<8x1xf32> to vector<1x8x1xf32>
    %cst_46 = arith.constant dense<0.000000e+00> : vector<1xf32>
    %74 = vector.multi_reduction <add>, %73, %cst_46 [1, 2] : vector<1x8x1xf32> to vector<1xf32>
    %75 = vector.shape_cast %74 : vector<1xf32> to vector<1x1x1xf32>
    %76 = vector.extract %75[0, 0, 0] : f32 from vector<1x1x1xf32>
    %77 = vector.broadcast %76 : f32 to vector<1x1xf32>
    %78 = math.sqrt %77 : vector<1x1xf32>
    %79 = arith.addf %38, %78 : vector<1x1xf32>
    %cst_47 = arith.constant dense<0.000000e+00> : vector<8x32xf32>
    %80 = tpu.matmul %63, %42, %cst_47 {dimension_numbers = #tpu.dot_dimension_numbers<[1], [0], [0], [1], [0, 0, 1, 1], [], []>} : vector<8x8xf32>, vector<8x32xf32>, vector<8x32xf32> -> vector<8x32xf32>
    %cst_48 = arith.constant 2.000000e-01 : f32
    %81 = vector.broadcast %cst_48 : f32 to vector<8x32xf32>
    %82 = arith.mulf %81, %80 : vector<8x32xf32>
    %83 = arith.maximumf %80, %82 : vector<8x32xf32>
    %c0_49 = arith.constant 0 : index
    %c0_50 = arith.constant 0 : index
    %84 = vector.load %arg12[%c0_49, %c0_50] : memref<16x32xf32, #tpu.memory_space<vmem>>, vector<8x32xf32>
    tpu.vector_store %arg12[%c0_49, %c0_50], %83 {strides = array<i32>} : memref<16x32xf32, #tpu.memory_space<vmem>>, vector<8x32xf32>,
    %c1_51 = arith.constant 1 : index
    %c0_52 = arith.constant 0 : index
    %c0_53 = arith.constant 0 : index
    %85 = vector.load %arg0[%c1_51, %c0_52, %c0_53] : memref<2x8x32xf32, #tpu.memory_space<vmem>>, vector<1x8x32xf32>
    %86 = vector.shape_cast %85 : vector<1x8x32xf32> to vector<8x32xf32>
    %87 = vector.extract_strided_slice %37 {offsets = [8, 0], sizes = [8, 32], strides = [1, 1]} : vector<16x32xf32> to vector<8x32xf32>
    %88 = arith.addf %86, %87 : vector<8x32xf32>
    "tpu.trace_start"() <{level = 10 : i32, message = "oc,sc->os"}> : () -> ()
    %cst_54 = arith.constant dense<0.000000e+00> : vector<8x8xf32>
    %89 = tpu.matmul %8, %88, %cst_54 {dimension_numbers = #tpu.dot_dimension_numbers<[1], [1], [0], [0], [0, 0, 1, 0], [], []>} : vector<8x32xf32>, vector<8x32xf32>, vector<8x8xf32> -> vector<8x8xf32>
    "tpu.trace_stop"() : () -> ()
    %c1_55 = arith.constant 1 : index
    %c0_56 = arith.constant 0 : index
    %c0_57 = arith.constant 0 : index
    %90 = vector.load %arg2[%c1_55, %c0_56, %c0_57] : memref<2x8x1xf32, #tpu.memory_space<vmem>>, vector<1x8x1xf32>
    %91 = vector.shape_cast %90 : vector<1x8x1xf32> to vector<8x1xf32>
    %92 = vector.broadcast %91 : vector<8x1xf32> to vector<8x8xf32>
    %93 = arith.addf %89, %92 : vector<8x8xf32>
    %94 = arith.negf %93 : vector<8x8xf32>
    %95 = math.exp %94 : vector<8x8xf32>
    %cst_58 = arith.constant 1.000000e+00 : f32
    %96 = vector.broadcast %cst_58 : f32 to vector<8x8xf32>
    %97 = arith.addf %96, %95 : vector<8x8xf32>
    %98 = arith.divf %96, %97 : vector<8x8xf32>
    %cst_59 = arith.constant dense<0.000000e+00> : vector<8xf32>
    %99 = vector.multi_reduction <add>, %98, %cst_59 [1] : vector<8x8xf32> to vector<8xf32>
    %100 = vector.shape_cast %99 : vector<8xf32> to vector<8x1xf32>
    %101 = math.rsqrt %100 : vector<8x1xf32>
    %cst_60 = arith.constant 6.250000e-02 : f32
    %102 = vector.broadcast %cst_60 : f32 to vector<8x1xf32>
    %103 = arith.mulf %101, %102 : vector<8x1xf32>
    %104 = vector.broadcast %103 : vector<8x1xf32> to vector<8x8xf32>
    %105 = arith.mulf %104, %98 : vector<8x8xf32>
    %106 = tpu.transpose %101, [1, 0] : vector<8x1xf32> -> vector<1x8xf32>
    %107 = vector.broadcast %106 : vector<1x8xf32> to vector<8x8xf32>
    %108 = arith.mulf %105, %107 : vector<8x8xf32>
    %109 = arith.addf %108, %5 : vector<8x8xf32>
    %110 = vector.extract_strided_slice %16 {offsets = [1, 0, 0], sizes = [1, 8, 1], strides = [1, 1, 1]} : vector<2x8x1xf32> to vector<1x8x1xf32>
    %111 = vector.shape_cast %110 : vector<1x8x1xf32> to vector<8x1xf32>
    %112 = tpu.transpose %111, [1, 0] : vector<8x1xf32> -> vector<1x8xf32>
    %113 = vector.broadcast %112 : vector<1x8xf32> to vector<8x8xf32>
    %114 = arith.mulf %109, %113 : vector<8x8xf32>
    %cst_61 = arith.constant dense<0.000000e+00> : vector<8xf32>
    %115 = vector.multi_reduction <add>, %114, %cst_61 [1] : vector<8x8xf32> to vector<8xf32>
    %116 = vector.shape_cast %115 : vector<8xf32> to vector<8x1xf32>
    %117 = arith.subf %111, %116 : vector<8x1xf32>
    %118 = arith.mulf %117, %117 : vector<8x1xf32>
    %119 = vector.shape_cast %118 : vector<8x1xf32> to vector<1x8x1xf32>
    %cst_62 = arith.constant dense<0.000000e+00> : vector<1xf32>
    %120 = vector.multi_reduction <add>, %119, %cst_62 [1, 2] : vector<1x8x1xf32> to vector<1xf32>
    %121 = vector.shape_cast %120 : vector<1xf32> to vector<1x1x1xf32>
    %122 = vector.extract %121[0, 0, 0] : f32 from vector<1x1x1xf32>
    %123 = vector.broadcast %122 : f32 to vector<1x1xf32>
    %124 = math.sqrt %123 : vector<1x1xf32>
    %125 = arith.addf %79, %124 : vector<1x1xf32>
    %cst_63 = arith.constant dense<0.000000e+00> : vector<8x32xf32>
    %126 = tpu.matmul %109, %88, %cst_63 {dimension_numbers = #tpu.dot_dimension_numbers<[1], [0], [0], [1], [0, 0, 1, 1], [], []>} : vector<8x8xf32>, vector<8x32xf32>, vector<8x32xf32> -> vector<8x32xf32>
    %cst_64 = arith.constant 2.000000e-01 : f32
    %127 = vector.broadcast %cst_64 : f32 to vector<8x32xf32>
    %128 = arith.mulf %127, %126 : vector<8x32xf32>
    %129 = arith.maximumf %126, %128 : vector<8x32xf32>
    %c8_65 = arith.constant 8 : index
    %c0_66 = arith.constant 0 : index
    %130 = vector.load %arg12[%c8_65, %c0_66] : memref<16x32xf32, #tpu.memory_space<vmem>>, vector<8x32xf32>
    tpu.vector_store %arg12[%c8_65, %c0_66], %129 {strides = array<i32>} : memref<16x32xf32, #tpu.memory_space<vmem>>, vector<8x32xf32>,
    %c0_67 = arith.constant 0 : index
    %c0_68 = arith.constant 0 : index
    %131 = vector.load %arg12[%c0_67, %c0_68] : memref<16x32xf32, #tpu.memory_space<vmem>>, vector<16x32xf32>
    %cst_69 = arith.constant dense<0.000000e+00> : vector<16x32xf32>
    %132 = tpu.matmul %131, %9, %cst_69 {dimension_numbers = #tpu.dot_dimension_numbers<[1], [0], [0], [1], [0, 0, 1, 1], [], []>} : vector<16x32xf32>, vector<32x32xf32>, vector<16x32xf32> -> vector<16x32xf32>
    %133 = vector.broadcast %10 : vector<1x32xf32> to vector<16x32xf32>
    %134 = arith.addf %132, %133 : vector<16x32xf32>
    %cst_70 = arith.constant 2.000000e-01 : f32
    %135 = vector.broadcast %cst_70 : f32 to vector<16x32xf32>
    %136 = arith.mulf %135, %134 : vector<16x32xf32>
    %137 = arith.maximumf %134, %136 : vector<16x32xf32>
    %138 = vector.extract_strided_slice %137 {offsets = [0, 0], sizes = [8, 32], strides = [1, 1]} : vector<16x32xf32> to vector<8x32xf32>
    %c0_71 = arith.constant 0 : index
    %c0_72 = arith.constant 0 : index
    %c0_73 = arith.constant 0 : index
    %139 = vector.load %arg10[%c0_71, %c0_72, %c0_73] : memref<2x8x32xf32, #tpu.memory_space<vmem>>, vector<1x8x32xf32>
    %140 = vector.shape_cast %139 : vector<1x8x32xf32> to vector<8x32xf32>
    %141 = vector.shape_cast %138 : vector<8x32xf32> to vector<1x8x32xf32>
    tpu.vector_store %arg10[%c0_71, %c0_72, %c0_73], %141 {strides = array<i32>} : memref<2x8x32xf32, #tpu.memory_space<vmem>>, vector<1x8x32xf32>,
    %142 = vector.extract_strided_slice %137 {offsets = [8, 0], sizes = [8, 32], strides = [1, 1]} : vector<16x32xf32> to vector<8x32xf32>
    %c1_74 = arith.constant 1 : index
    %c0_75 = arith.constant 0 : index
    %c0_76 = arith.constant 0 : index
    %143 = vector.load %arg10[%c1_74, %c0_75, %c0_76] : memref<2x8x32xf32, #tpu.memory_space<vmem>>, vector<1x8x32xf32>
    %144 = vector.shape_cast %143 : vector<1x8x32xf32> to vector<8x32xf32>
    %145 = vector.shape_cast %142 : vector<8x32xf32> to vector<1x8x32xf32>
    tpu.vector_store %arg10[%c1_74, %c0_75, %c0_76], %145 {strides = array<i32>} : memref<2x8x32xf32, #tpu.memory_space<vmem>>, vector<1x8x32xf32>,
    %c0_77 = arith.constant 0 : index
    %c0_78 = arith.constant 0 : index
    %146 = vector.load %arg11[%c0_77, %c0_78] : memref<1x1xf32, #tpu.memory_space<vmem>>, vector<1x1xf32>
    tpu.vector_store %arg11[%c0_77, %c0_78], %125 {strides = array<i32>} : memref<1x1xf32, #tpu.memory_space<vmem>>, vector<1x1xf32>,
    return
  }
}

</mosaic_0001>

<llo_original>
// kernel: dgcn_forward.1
$region0: #{dgcn_forward.1}
  #allocation0 [shape = 'u32[]', space=smem, size = 0x4, offset = 0x4, fixed_abs, tag = 'smem constant byte address 0x4 - core index']
  #allocation1 [shape = 'u32[144,128]{1,0:T(1,128)}', space=vmem, size = 0x12000, scoped, tag = 'internal scratch']
  #allocation2 [shape = 'f32[16,32]{1,0:T(8,128)}', space=vmem, size = 0x2000, scoped, tag = 'scratch operand']
  %s0 = inlined_call_operand.hbm [shape: f32[2,8,32], index: 0, kind: input, shape index: {}]
  %s1 = inlined_call_operand.vmem [shape: f32[2,8,1], index: 1, kind: input, shape index: {}]
  %s2 = inlined_call_operand.vmem [shape: f32[2,8,1], index: 2, kind: input, shape index: {}]
  %s3 = inlined_call_operand.hbm [shape: f32[8,8], index: 3, kind: input, shape index: {}]
  %s4 = inlined_call_operand.hbm [shape: f32[8,8], index: 4, kind: input, shape index: {}]
  %s5 = inlined_call_operand.vmem [shape: f32[32,32], index: 5, kind: input, shape index: {}]
  %s6 = inlined_call_operand.vmem [shape: f32[1,32], index: 6, kind: input, shape index: {}]
  %s7 = inlined_call_operand.vmem [shape: f32[8,32], index: 7, kind: input, shape index: {}]
  %s8 = inlined_call_operand.vmem [shape: f32[32,32], index: 8, kind: input, shape index: {}]
  %s9 = inlined_call_operand.vmem [shape: f32[1,32], index: 9, kind: input, shape index: {}]
  %s10 = inlined_call_operand.hbm [shape: f32[2,8,32], index: 10, kind: output, shape index: {0}]
  %s11 = inlined_call_operand.hbm [shape: f32[1,1], index: 11, kind: output, shape index: {1}]
  %12 = xla_tuple %s10, %s11
  %s13 = sld [smem:[#allocation0]]
  $region70: #{dgcn_forward.1} parent=0
    _
  %s15 = ssub.s32 1, %s13
  %s16 = scalar_select 0, %s15, %s13
  $region1: #{dgcn_forward.1} parent=0
    #allocation3 [shape = 'u8[8192]{0}', space=vmem, size = 0x2000, scoped, tag = 'input window, operand 0, single buffered']
    #allocation4 [shape = 's32[1]{0}', space=sflag, size = 0x4, scoped, tag = 'scoped memory for dgcn_forward.1']
    #allocation5 [shape = 's32[1]{0}', space=sflag, size = 0x4, scoped, tag = 'scoped memory for dgcn_forward.1']
    #allocation6 [shape = 'u8[4096]{0}', space=vmem, size = 0x1000, scoped, tag = 'input window, operand 3, single buffered']
    #allocation7 [shape = 's32[1]{0}', space=sflag, size = 0x4, scoped, tag = 'scoped memory for dgcn_forward.1']
    #allocation8 [shape = 'u8[4096]{0}', space=vmem, size = 0x1000, scoped, tag = 'input window, operand 4, single buffered']
    #allocation9 [shape = 'u8[8192]{0}', space=vmem, size = 0x2000, scoped, tag = 'output window, operand 0, single buffered']
    #allocation10 [shape = 'u8[512]{0}', space=vmem, size = 0x400, scoped, tag = 'output window, operand 1, single buffered']
    #allocation11 [shape = 's32[1]{0}', space=sflag, size = 0x4, scoped, tag = 'scoped memory for dgcn_forward.1']
    %17 = vsyncpa [#allocation4], 0
    %18 = vsyncpa [#allocation7], 0
    %19 = vsyncpa [#allocation5], 0
    %20 = vsyncpa [#allocation11], 0
    // Predicated region
    $region2: #{dgcn_forward.1} parent=1 // pred_check
      _
    $region3: #{dgcn_forward.1} parent=1 // pred_check_branch
      %22 = sbr.rel (0) target = $region5
    $region4: #{dgcn_forward.1} parent=1 // pred_region
      %s24 = ssub.s32 256, 256
      %25 = vsyncadd [#allocation4], %s24
      %s26 = sshll.u32 [#allocation3], 4
      %s27 = int_to_ptr.vmem [resolvable:$true] %s26
      %32 = dma.hbm_to_vmem [thread:$0]  %s0, 256, %s27, [#allocation4], 128, 128, 8
    $region5: #{dgcn_forward.1} parent=1 // pred_fallthru
      _
    // Predicated region
    $region6: #{dgcn_forward.1} parent=1 // pred_check
      _
    $region7: #{dgcn_forward.1} parent=1 // pred_check_branch
      %34 = sbr.rel (0) target = $region9
    $region8: #{dgcn_forward.1} parent=1 // pred_region
      _
    $region9: #{dgcn_forward.1} parent=1 // pred_fallthru
      _
    // Predicated region
    $region10: #{dgcn_forward.1} parent=1 // pred_check
      _
    $region11: #{dgcn_forward.1} parent=1 // pred_check_branch
      %36 = sbr.rel (0) target = $region13
    $region12: #{dgcn_forward.1} parent=1 // pred_region
      _
    $region13: #{dgcn_forward.1} parent=1 // pred_fallthru
      _
    // Predicated region
    $region14: #{dgcn_forward.1} parent=1 // pred_check
      _
    $region15: #{dgcn_forward.1} parent=1 // pred_check_branch
      %38 = sbr.rel (0) target = $region17
    $region16: #{dgcn_forward.1} parent=1 // pred_region
      %s40 = ssub.s32 128, 128
      %41 = vsyncadd [#allocation7], %s40
      %s43 = sshll.u32 [#allocation6], 4
      %s44 = int_to_ptr.vmem [resolvable:$true] %s43
      %46 = dma.hbm_to_vmem [thread:$0]  %s3, 128, %s44, [#allocation7]
    $region17: #{dgcn_forward.1} parent=1 // pred_fallthru
      _
    // Predicated region
    $region18: #{dgcn_forward.1} parent=1 // pred_check
      _
    $region19: #{dgcn_forward.1} parent=1 // pred_check_branch
      %48 = sbr.rel (0) target = $region21
    $region20: #{dgcn_forward.1} parent=1 // pred_region
      %s50 = ssub.s32 128, 128
      %51 = vsyncadd [#allocation7], %s50
      %s53 = sshll.u32 [#allocation8], 4
      %s54 = int_to_ptr.vmem [resolvable:$true] %s53
      %56 = dma.hbm_to_vmem [thread:$0]  %s4, 128, %s54, [#allocation7]
    $region21: #{dgcn_forward.1} parent=1 // pred_fallthru
      _
    // Predicated region
    $region22: #{dgcn_forward.1} parent=1 // pred_check
      _
    $region23: #{dgcn_forward.1} parent=1 // pred_check_branch
      %58 = sbr.rel (0) target = $region25
    $region24: #{dgcn_forward.1} parent=1 // pred_region
      _
    $region25: #{dgcn_forward.1} parent=1 // pred_fallthru
      _
    // Predicated region
    $region26: #{dgcn_forward.1} parent=1 // pred_check
      _
    $region27: #{dgcn_forward.1} parent=1 // pred_check_branch
      %60 = sbr.rel (0) target = $region29
    $region28: #{dgcn_forward.1} parent=1 // pred_region
      _
    $region29: #{dgcn_forward.1} parent=1 // pred_fallthru
      _
    // Predicated region
    $region30: #{dgcn_forward.1} parent=1 // pred_check
      _
    $region31: #{dgcn_forward.1} parent=1 // pred_check_branch
      %62 = sbr.rel (0) target = $region33
    $region32: #{dgcn_forward.1} parent=1 // pred_region
      _
    $region33: #{dgcn_forward.1} parent=1 // pred_fallthru
      _
    // Predicated region
    $region34: #{dgcn_forward.1} parent=1 // pred_check
      _
    $region35: #{dgcn_forward.1} parent=1 // pred_check_branch
      %64 = sbr.rel (0) target = $region37
    $region36: #{dgcn_forward.1} parent=1 // pred_region
      _
    $region37: #{dgcn_forward.1} parent=1 // pred_fallthru
      _
    // Predicated region
    $region38: #{dgcn_forward.1} parent=1 // pred_check
      _
    $region39: #{dgcn_forward.1} parent=1 // pred_check_branch
      %66 = sbr.rel (0) target = $region41
    $region40: #{dgcn_forward.1} parent=1 // pred_region
      _
    $region41: #{dgcn_forward.1} parent=1 // pred_fallthru
      _
    // Predicated region
    $region42: #{dgcn_forward.1} parent=1 // pred_check
      _
    $region43: #{dgcn_forward.1} parent=1 // pred_check_branch
      %68 = sbr.rel (0) target = $region45
    $region44: #{dgcn_forward.1} parent=1 // pred_region
      %69 = dma.done [#allocation4], 256
    $region45: #{dgcn_forward.1} parent=1 // pred_fallthru
      _
    // Predicated region
    $region46: #{dgcn_forward.1} parent=1 // pred_check
      _
    $region47: #{dgcn_forward.1} parent=1 // pred_check_branch
      %71 = sbr.rel (0) target = $region49
    $region48: #{dgcn_forward.1} parent=1 // pred_region
      %72 = dma.done [#allocation7], 128
    $region49: #{dgcn_forward.1} parent=1 // pred_fallthru
      _
    // Predicated region
    $region50: #{dgcn_forward.1} parent=1 // pred_check
      _
    $region51: #{dgcn_forward.1} parent=1 // pred_check_branch
      %74 = sbr.rel (0) target = $region53
    $region52: #{dgcn_forward.1} parent=1 // pred_region
      %75 = dma.done [#allocation7], 128
    $region53: #{dgcn_forward.1} parent=1 // pred_fallthru
      _
    %v76 = vld [vmem:[#allocation6] sm:$0xff]
    %v77 = vmul.f32 %v76, 0.125
    %v78 = vld [vmem:[#allocation8] sm:$0xff]
    %v79 = vmul.f32 %v78, 0.0625
    %v80 = vld [vmem:[%s5] sm:$0xff]
    %v81 = vld [vmem:[%s5 + $0x8] sm:$0xff]
    %v82 = vld [vmem:[%s5 + $0x10] sm:$0xff]
    %v83 = vld [vmem:[%s5 + $0x18] sm:$0xff]
    %v84 = vld [vmem:[%s6] sm:$0x1]
    %v85 = vld [vmem:[%s7] sm:$0xff]
    %v86 = vld [vmem:[%s8] sm:$0xff]
    %v87 = vld [vmem:[%s8 + $0x8] sm:$0xff]
    %v88 = vld [vmem:[%s8 + $0x10] sm:$0xff]
    %v89 = vld [vmem:[%s8 + $0x18] sm:$0xff]
    %v90 = vld [vmem:[%s9] sm:$0x1]
    %v91 = vld [vmem:[%s1] sm:$0xff]
    %v92 = vld [vmem:[%s1 + $0x8] sm:$0xff]
    %v93 = vxor.u32 %v91, 2147483648
    %v94 = vxor.u32 %v92, 2147483648
    %v95 = vmul.f32 %v93, 1.442695
    %v96 = vpow.pop %v95
    %v97 = vmul.f32 %v94, 1.442695
    %v98 = vpow.pop %v97
    %v99 = vadd.f32 %v96, 1.0
    %v100 = vadd.f32 %v98, 1.0
    %v101 = vrcp.pop %v99
    %v102 = vmul.f32 1.0, %v101
    %v103 = vrcp.pop %v100
    %v104 = vmul.f32 1.0, %v103
    %v105 = vld [vmem:[#allocation3] sm:$0xff]
    %vm106 = vcmask 64512
    %v108 = vsel %vm106, %v77, 0
    %110 = vmatprep.subr.mxu0 0.0
    %111 = vmatpush1.msra.mxu0 %v105
    %112 = vmatprep.subr.mxu0 0.0
    %113 = vmatpush1.msra.mxu0 0.0
    %114 = vmatprep.subr.mxu0 0.0
    %115 = vmatpush1.msra.mxu0 0.0
    %116 = vmatprep.subr.mxu0 0.0
    %117 = vmatpush1.msra.mxu0 0.0
    %118 = vmatprep.subr.mxu0 0.0
    %119 = vmatpush1.msra.mxu0 0.0
    %120 = vmatprep.subr.mxu0 0.0
    %121 = vmatpush1.msra.mxu0 0.0
    %122 = vmatprep.subr.mxu0 0.0
    %123 = vmatpush1.msra.mxu0 0.0
    %124 = vmatprep.subr.mxu0 0.0
    %125 = vmatpush1.msra.mxu0 0.0
    %126 = vmatprep.subr.mxu0 0.0
    %127 = vmatpush1.msra.mxu0 0.0
    %128 = vmatprep.subr.mxu0 0.0
    %129 = vmatpush1.msra.mxu0 0.0
    %130 = vmatprep.subr.mxu0 0.0
    %131 = vmatpush1.msra.mxu0 0.0
    %132 = vmatprep.subr.mxu0 0.0
    %133 = vmatpush1.msra.mxu0 0.0
    %134 = vmatprep.subr.mxu0 0.0
    %135 = vmatpush1.msra.mxu0 0.0
    %136 = vmatprep.subr.mxu0 0.0
    %137 = vmatpush1.msra.mxu0 0.0
    %138 = vmatprep.subr.mxu0 0.0
    %139 = vmatpush1.msra.mxu0 0.0
    %140 = vmatprep.subr.mxu0 0.0
    %141 = vmatpush1.msra.mxu0 0.0
    %142 = vmatprep.subr.mxu0 0.0
    %143 = vmatpush1.msra.mxu0 0.0
    %144 = vmatprep.subr.mxu0 0.0
    %145 = vmatpush1.msra.mxu0 0.0
    %146 = vmatprep.subr.mxu0 0.0
    %147 = vmatpush1.msra.mxu0 0.0
    %148 = vmatprep.subr.mxu0 0.0
    %149 = vmatpush1.msra.mxu0 0.0
    %150 = vmatprep.subr.mxu0 0.0
    %151 = vmatpush1.msra.mxu0 0.0
    %152 = vmatprep.subr.mxu0 0.0
    %153 = vmatpush1.msra.mxu0 0.0
    %154 = vmatprep.subr.mxu0 0.0
    %155 = vmatpush1.msra.mxu0 0.0
    %156 = vmatprep.subr.mxu0 0.0
    %157 = vmatpush1.msra.mxu0 0.0
    %158 = vmatprep.subr.mxu0 0.0
    %159 = vmatpush1.msra.mxu0 0.0
    %160 = vmatprep.subr.mxu0 0.0
    %161 = vmatpush1.msra.mxu0 0.0
    %162 = vmatprep.subr.mxu0 0.0
    %163 = vmatpush1.msra.mxu0 0.0
    %164 = vmatprep.subr.mxu0 0.0
    %165 = vmatpush1.msra.mxu0 0.0
    %166 = vmatprep.subr.mxu0 0.0
    %167 = vmatpush1.msra.mxu0 0.0
    %168 = vmatprep.subr.mxu0 0.0
    %169 = vmatpush1.msra.mxu0 0.0
    %170 = vmatprep.subr.mxu0 0.0
    %171 = vmatpush1.msra.mxu0 0.0
    %172 = vmatprep.subr.mxu0 0.0
    %173 = vmatpush1.msra.mxu0 0.0
    %174 = vmatprep.mubr.f32.mxu0 0.0
    %175 = vmatmul.mubr.f32.gmra.mrb[0].mxu0 %v108
    %v176 = vpop.f32.mrb[0].mxu0
    %v177 = vadd.f32 0.0, %v176
    %v178 = vpop.f32.mrb[0].mxu0
    %179 = vdwg.mxu0
    %v180 = vmul.f32 %v177, 0.2
    %v181 = vmax.f32 %v177, %v180
    %vm182 = vcmask 261120
    %183 = vst.msk [vmem:[#allocation2] sm:$0xff] %vm182, %v181
    %s184 = scalar_lea.vmem [#allocation3], 8
    %v185 = vld [vmem:[%s184] sm:$0xff]
    %186 = vmatprep.subr.mxu0 0.0
    %187 = vmatpush1.msra.mxu0 %v185
    %188 = vmatprep.subr.mxu0 0.0
    %189 = vmatpush1.msra.mxu0 0.0
    %190 = vmatprep.subr.mxu0 0.0
    %191 = vmatpush1.msra.mxu0 0.0
    %192 = vmatprep.subr.mxu0 0.0
    %193 = vmatpush1.msra.mxu0 0.0
    %194 = vmatprep.subr.mxu0 0.0
    %195 = vmatpush1.msra.mxu0 0.0
    %196 = vmatprep.subr.mxu0 0.0
    %197 = vmatpush1.msra.mxu0 0.0
    %198 = vmatprep.subr.mxu0 0.0
    %199 = vmatpush1.msra.mxu0 0.0
    %200 = vmatprep.subr.mxu0 0.0
    %201 = vmatpush1.msra.mxu0 0.0
    %202 = vmatprep.subr.mxu0 0.0
    %203 = vmatpush1.msra.mxu0 0.0
    %204 = vmatprep.subr.mxu0 0.0
    %205 = vmatpush1.msra.mxu0 0.0
    %206 = vmatprep.subr.mxu0 0.0
    %207 = vmatpush1.msra.mxu0 0.0
    %208 = vmatprep.subr.mxu0 0.0
    %209 = vmatpush1.msra.mxu0 0.0
    %210 = vmatprep.subr.mxu0 0.0
    %211 = vmatpush1.msra.mxu0 0.0
    %212 = vmatprep.subr.mxu0 0.0
    %213 = vmatpush1.msra.mxu0 0.0
    %214 = vmatprep.subr.mxu0 0.0
    %215 = vmatpush1.msra.mxu0 0.0
    %216 = vmatprep.subr.mxu0 0.0
    %217 = vmatpush1.msra.mxu0 0.0
    %218 = vmatprep.subr.mxu0 0.0
    %219 = vmatpush1.msra.mxu0 0.0
    %220 = vmatprep.subr.mxu0 0.0
    %221 = vmatpush1.msra.mxu0 0.0
    %222 = vmatprep.subr.mxu0 0.0
    %223 = vmatpush1.msra.mxu0 0.0
    %224 = vmatprep.subr.mxu0 0.0
    %225 = vmatpush1.msra.mxu0 0.0
    %226 = vmatprep.subr.mxu0 0.0
    %227 = vmatpush1.msra.mxu0 0.0
    %228 = vmatprep.subr.mxu0 0.0
    %229 = vmatpush1.msra.mxu0 0.0
    %230 = vmatprep.subr.mxu0 0.0
    %231 = vmatpush1.msra.mxu0 0.0
    %232 = vmatprep.subr.mxu0 0.0
    %233 = vmatpush1.msra.mxu0 0.0
    %234 = vmatprep.subr.mxu0 0.0
    %235 = vmatpush1.msra.mxu0 0.0
    %236 = vmatprep.subr.mxu0 0.0
    %237 = vmatpush1.msra.mxu0 0.0
    %238 = vmatprep.subr.mxu0 0.0
    %239 = vmatpush1.msra.mxu0 0.0
    %240 = vmatprep.subr.mxu0 0.0
    %241 = vmatpush1.msra.mxu0 0.0
    %242 = vmatprep.subr.mxu0 0.0
    %243 = vmatpush1.msra.mxu0 0.0
    %244 = vmatprep.subr.mxu0 0.0
    %245 = vmatpush1.msra.mxu0 0.0
    %246 = vmatprep.subr.mxu0 0.0
    %247 = vmatpush1.msra.mxu0 0.0
    %248 = vmatprep.subr.mxu0 0.0
    %249 = vmatpush1.msra.mxu0 0.0
    %250 = vmatprep.mubr.f32.mxu0 0.0
    %251 = vmatmul.mubr.f32.gmra.mrb[0].mxu0 %v108
    %v252 = vpop.f32.mrb[0].mxu0
    %v253 = vadd.f32 0.0, %v252
    %v254 = vpop.f32.mrb[0].mxu0
    %255 = vdwg.mxu0
    %v256 = vmul.f32 %v253, 0.2
    %v257 = vmax.f32 %v253, %v256
    %258 = vst.msk [vmem:[#allocation2 + $0x8] sm:$0xff] %vm182, %v257
    %v259 = vld [vmem:[#allocation2] sm:$0xff]
    %v260 = vld [vmem:[#allocation2 + $0x8] sm:$0xff]
    %v262 = vlaneseq
    %v263 = vshrl.u32 %v262, 7
    %v264 = vsub.s32 0, %v263
    %v265 = vrot.slane %v84, %v264
    %v268 = vsel %vm182, %v259, 0
    %v271 = vsel %vm182, %v260, 0
    %273 = vmatprep.subr.mxu0 0.0
    %274 = vmatpush1.msra.mxu0 %v80
    %275 = vmatprep.subr.mxu0 0.0
    %276 = vmatpush1.msra.mxu0 %v81
    %277 = vmatprep.subr.mxu0 0.0
    %278 = vmatpush1.msra.mxu0 %v82
    %279 = vmatprep.subr.mxu0 0.0
    %280 = vmatpush1.msra.mxu0 %v83
    %281 = vmatprep.subr.mxu0 0.0
    %282 = vmatpush1.msra.mxu0 0.0
    %283 = vmatprep.subr.mxu0 0.0
    %284 = vmatpush1.msra.mxu0 0.0
    %285 = vmatprep.subr.mxu0 0.0
    %286 = vmatpush1.msra.mxu0 0.0
    %287 = vmatprep.subr.mxu0 0.0
    %288 = vmatpush1.msra.mxu0 0.0
    %289 = vmatprep.subr.mxu0 0.0
    %290 = vmatpush1.msra.mxu0 0.0
    %291 = vmatprep.subr.mxu0 0.0
    %292 = vmatpush1.msra.mxu0 0.0
    %293 = vmatprep.subr.mxu0 0.0
    %294 = vmatpush1.msra.mxu0 0.0
    %295 = vmatprep.subr.mxu0 0.0
    %296 = vmatpush1.msra.mxu0 0.0
    %297 = vmatprep.subr.mxu0 0.0
    %298 = vmatpush1.msra.mxu0 0.0
    %299 = vmatprep.subr.mxu0 0.0
    %300 = vmatpush1.msra.mxu0 0.0
    %301 = vmatprep.subr.mxu0 0.0
    %302 = vmatpush1.msra.mxu0 0.0
    %303 = vmatprep.subr.mxu0 0.0
    %304 = vmatpush1.msra.mxu0 0.0
    %305 = vmatprep.subr.mxu0 0.0
    %306 = vmatpush1.msra.mxu0 0.0
    %307 = vmatprep.subr.mxu0 0.0
    %308 = vmatpush1.msra.mxu0 0.0
    %309 = vmatprep.subr.mxu0 0.0
    %310 = vmatpush1.msra.mxu0 0.0
    %311 = vmatprep.subr.mxu0 0.0
    %312 = vmatpush1.msra.mxu0 0.0
    %313 = vmatprep.subr.mxu0 0.0
    %314 = vmatpush1.msra.mxu0 0.0
    %315 = vmatprep.subr.mxu0 0.0
    %316 = vmatpush1.msra.mxu0 0.0
    %317 = vmatprep.subr.mxu0 0.0
    %318 = vmatpush1.msra.mxu0 0.0
    %319 = vmatprep.subr.mxu0 0.0
    %320 = vmatpush1.msra.mxu0 0.0
    %321 = vmatprep.subr.mxu0 0.0
    %322 = vmatpush1.msra.mxu0 0.0
    %323 = vmatprep.subr.mxu0 0.0
    %324 = vmatpush1.msra.mxu0 0.0
    %325 = vmatprep.subr.mxu0 0.0
    %326 = vmatpush1.msra.mxu0 0.0
    %327 = vmatprep.subr.mxu0 0.0
    %328 = vmatpush1.msra.mxu0 0.0
    %329 = vmatprep.subr.mxu0 0.0
    %330 = vmatpush1.msra.mxu0 0.0
    %331 = vmatprep.subr.mxu0 0.0
    %332 = vmatpush1.msra.mxu0 0.0
    %333 = vmatprep.subr.mxu0 0.0
    %334 = vmatpush1.msra.mxu0 0.0
    %335 = vmatprep.subr.mxu0 0.0
    %336 = vmatpush1.msra.mxu0 0.0
    %337 = vmatprep.mubr.f32.mxu0 0.0
    %338 = vmatmul.mubr.f32.gmra.mrb[0].mxu0 %v268
    %v339 = vpop.f32.mrb[0].mxu0
    %v340 = vadd.f32 %v265, %v339
    %v341 = vpop.f32.mrb[0].mxu0
    %342 = vmatprep.mubr.f32.mxu0 0.0
    %343 = vmatmul.mubr.f32.gmra.mrb[0].mxu0 %v271
    %v344 = vpop.f32.mrb[0].mxu0
    %v345 = vadd.f32 %v265, %v344
    %v346 = vpop.f32.mrb[0].mxu0
    %347 = vdwg.mxu0
    %v348 = vmul.f32 %v340, 0.2
    %v349 = vmul.f32 %v345, 0.2
    %v350 = vmax.f32 %v340, %v348
    %v351 = vmax.f32 %v345, %v349
    %v352 = vld [vmem:[#allocation3] sm:$0xff]
    %v353 = vadd.f32 %v352, %v350
    %v354 = vld [vmem:[%s2] sm:$0xff]
    %356 = vset.pattern.permute.xlu0 0
    %357 = vperm.xlu0 %356, %v354
    %v358 = vpop.permute.xlu0 %357
    %v361 = vsel %vm182, %v85, 0
    %v364 = vsel %vm182, %v353, 0
    %366 = vmatprep.subr.mxu0 0.0
    %367 = vmatpush1.xpose.msra.mxu0 %v364
    %368 = vmatprep.subr.mxu0 0.0
    %369 = vmatpush1.xpose.msra.mxu0 0.0
    %370 = vmatprep.subr.mxu0 0.0
    %371 = vmatpush1.xpose.msra.mxu0 0.0
    %372 = vmatprep.subr.mxu0 0.0
    %373 = vmatpush1.xpose.msra.mxu0 0.0
    %374 = vmatprep.subr.mxu0 0.0
    %375 = vmatpush1.xpose.msra.mxu0 0.0
    %376 = vmatprep.subr.mxu0 0.0
    %377 = vmatpush1.xpose.msra.mxu0 0.0
    %378 = vmatprep.subr.mxu0 0.0
    %379 = vmatpush1.xpose.msra.mxu0 0.0
    %380 = vmatprep.subr.mxu0 0.0
    %381 = vmatpush1.xpose.msra.mxu0 0.0
    %382 = vmatprep.subr.mxu0 0.0
    %383 = vmatpush1.xpose.msra.mxu0 0.0
    %384 = vmatprep.subr.mxu0 0.0
    %385 = vmatpush1.xpose.msra.mxu0 0.0
    %386 = vmatprep.subr.mxu0 0.0
    %387 = vmatpush1.xpose.msra.mxu0 0.0
    %388 = vmatprep.subr.mxu0 0.0
    %389 = vmatpush1.xpose.msra.mxu0 0.0
    %390 = vmatprep.subr.mxu0 0.0
    %391 = vmatpush1.xpose.msra.mxu0 0.0
    %392 = vmatprep.subr.mxu0 0.0
    %393 = vmatpush1.xpose.msra.mxu0 0.0
    %394 = vmatprep.subr.mxu0 0.0
    %395 = vmatpush1.xpose.msra.mxu0 0.0
    %396 = vmatprep.subr.mxu0 0.0
    %397 = vmatpush1.xpose.msra.mxu0 0.0
    %398 = vmatprep.subr.mxu0 0.0
    %399 = vmatpush1.xpose.msra.mxu0 0.0
    %400 = vmatprep.subr.mxu0 0.0
    %401 = vmatpush1.xpose.msra.mxu0 0.0
    %402 = vmatprep.subr.mxu0 0.0
    %403 = vmatpush1.xpose.msra.mxu0 0.0
    %404 = vmatprep.subr.mxu0 0.0
    %405 = vmatpush1.xpose.msra.mxu0 0.0
    %406 = vmatprep.subr.mxu0 0.0
    %407 = vmatpush1.xpose.msra.mxu0 0.0
    %408 = vmatprep.subr.mxu0 0.0
    %409 = vmatpush1.xpose.msra.mxu0 0.0
    %410 = vmatprep.subr.mxu0 0.0
    %411 = vmatpush1.xpose.msra.mxu0 0.0
    %412 = vmatprep.subr.mxu0 0.0
    %413 = vmatpush1.xpose.msra.mxu0 0.0
    %414 = vmatprep.subr.mxu0 0.0
    %415 = vmatpush1.xpose.msra.mxu0 0.0
    %416 = vmatprep.subr.mxu0 0.0
    %417 = vmatpush1.xpose.msra.mxu0 0.0
    %418 = vmatprep.subr.mxu0 0.0
    %419 = vmatpush1.xpose.msra.mxu0 0.0
    %420 = vmatprep.subr.mxu0 0.0
    %421 = vmatpush1.xpose.msra.mxu0 0.0
    %422 = vmatprep.subr.mxu0 0.0
    %423 = vmatpush1.xpose.msra.mxu0 0.0
    %424 = vmatprep.subr.mxu0 0.0
    %425 = vmatpush1.xpose.msra.mxu0 0.0
    %426 = vmatprep.subr.mxu0 0.0
    %427 = vmatpush1.xpose.msra.mxu0 0.0
    %428 = vmatprep.subr.mxu0 0.0
    %429 = vmatpush1.xpose.msra.mxu0 0.0
    %430 = vmatprep.mubr.f32.mxu0 0.0
    %431 = vmatmul.mubr.f32.gmra.mrb[0].mxu0 %v361
    %v432 = vpop.f32.mrb[0].mxu0
    %v433 = vadd.f32 %v358, %v432
    %v434 = vpop.f32.mrb[0].mxu0
    %435 = vdwg.mxu0
    %v436 = vxor.u32 %v433, 2147483648
    %v437 = vmul.f32 %v436, 1.442695
    %v438 = vpow.pop %v437
    %v439 = vadd.f32 %v438, 1.0
    %v440 = vrcp.pop %v439
    %v441 = vmul.f32 1.0, %v440
    %v442 = vsel %vm106, %v441, 0.0
    %443 = vadd.xlane.f32.xlu0 %v442
    %v444 = vpop.xlane.xlu0 %443
    %v445 = vrsqrt.pop %v444
    %v446 = vmul.f32 %v445, 0.0625
    %v447 = vmul.f32 %v446, %v441
    %448 = vxpose.xlu0.b32.start [1/16] %v445, 128
    %449 = vxpose.xlu0.b32.cont [2/16] 0.0, 128
    %450 = vxpose.xlu0.b32.cont [3/16] 0.0, 128
    %451 = vxpose.xlu0.b32.cont [4/16] 0.0, 128
    %452 = vxpose.xlu0.b32.cont [5/16] 0.0, 128
    %453 = vxpose.xlu0.b32.cont [6/16] 0.0, 128
    %454 = vxpose.xlu0.b32.cont [7/16] 0.0, 128
    %455 = vxpose.xlu0.b32.cont [8/16] 0.0, 128
    %456 = vxpose.xlu0.b32.cont [9/16] 0.0, 128
    %457 = vxpose.xlu0.b32.cont [10/16] 0.0, 128
    %458 = vxpose.xlu0.b32.cont [11/16] 0.0, 128
    %459 = vxpose.xlu0.b32.cont [12/16] 0.0, 128
    %460 = vxpose.xlu0.b32.cont [13/16] 0.0, 128
    %461 = vxpose.xlu0.b32.cont [14/16] 0.0, 128
    %462 = vxpose.xlu0.b32.cont [15/16] 0.0, 128
    %463 = vxpose.xlu0.b32.end [16/16] 0.0, 128
    %v464 = vpop.trf.xlu0
    %v465 = vpop.trf.xlu0
    %v466 = vpop.trf.xlu0
    %v467 = vpop.trf.xlu0
    %v468 = vpop.trf.xlu0
    %v469 = vpop.trf.xlu0
    %v470 = vpop.trf.xlu0
    %v471 = vpop.trf.xlu0
    %v472 = vpop.trf.xlu0
    %v473 = vpop.trf.xlu0
    %v474 = vpop.trf.xlu0
    %v475 = vpop.trf.xlu0
    %v476 = vpop.trf.xlu0
    %v477 = vpop.trf.xlu0
    %v478 = vpop.trf.xlu0
    %v479 = vpop.trf.xlu0
    %v480 = vlaneseq
    %v481 = vshrl.u32 %v480, 7
    %v482 = vsub.s32 0, %v481
    %v483 = vrot.slane %v464, %v482
    %v484 = vmul.f32 %v447, %v483
    %v485 = vadd.f32 %v484, %v79
    %486 = vxpose.xlu0.b32.start [1/16] %v102, 128
    %487 = vxpose.xlu0.b32.cont [2/16] 0.0, 128
    %488 = vxpose.xlu0.b32.cont [3/16] 0.0, 128
    %489 = vxpose.xlu0.b32.cont [4/16] 0.0, 128
    %490 = vxpose.xlu0.b32.cont [5/16] 0.0, 128
    %491 = vxpose.xlu0.b32.cont [6/16] 0.0, 128
    %492 = vxpose.xlu0.b32.cont [7/16] 0.0, 128
    %493 = vxpose.xlu0.b32.cont [8/16] 0.0, 128
    %494 = vxpose.xlu0.b32.cont [9/16] 0.0, 128
    %495 = vxpose.xlu0.b32.cont [10/16] 0.0, 128
    %496 = vxpose.xlu0.b32.cont [11/16] 0.0, 128
    %497 = vxpose.xlu0.b32.cont [12/16] 0.0, 128
    %498 = vxpose.xlu0.b32.cont [13/16] 0.0, 128
    %499 = vxpose.xlu0.b32.cont [14/16] 0.0, 128
    %500 = vxpose.xlu0.b32.cont [15/16] 0.0, 128
    %501 = vxpose.xlu0.b32.end [16/16] 0.0, 128
    %v502 = vpop.trf.xlu0
    %v503 = vpop.trf.xlu0
    %v504 = vpop.trf.xlu0
    %v505 = vpop.trf.xlu0
    %v506 = vpop.trf.xlu0
    %v507 = vpop.trf.xlu0
    %v508 = vpop.trf.xlu0
    %v509 = vpop.trf.xlu0
    %v510 = vpop.trf.xlu0
    %v511 = vpop.trf.xlu0
    %v512 = vpop.trf.xlu0
    %v513 = vpop.trf.xlu0
    %v514 = vpop.trf.xlu0
    %v515 = vpop.trf.xlu0
    %v516 = vpop.trf.xlu0
    %v517 = vpop.trf.xlu0
    %v518 = vlaneseq
    %v519 = vshrl.u32 %v518, 7
    %v520 = vsub.s32 0, %v519
    %v521 = vrot.slane %v502, %v520
    %v522 = vmul.f32 %v485, %v521
    %v523 = vsel %vm106, %v522, 0.0
    %524 = vadd.xlane.f32.xlu0 %v523
    %v525 = vpop.xlane.xlu0 %524
    %v526 = vsub.f32 %v102, %v525
    %v527 = vmul.f32 %v526, %v526
    %vm528 = vcmask 7168
    %v529 = vsel %vm528, %v527, 0.0
    %530 = vadd.xlane.f32.xlu0 %v529
    %v531 = vpop.xlane.xlu0 %530
    %v532 = vrot.slane %v531, 4
    %v533 = vadd.f32 %v531, %v532
    %v534 = vrot.slane %v533, 2
    %v535 = vadd.f32 %v533, %v534
    %v536 = vrot.slane %v535, 1
    %v537 = vadd.f32 %v535, %v536
    %s538 = vtos %v537
    %v539 = vstv %s538
    %v540 = vrsqrt.pop %v539
    %v541 = vmul.f32 %v539, %v540
    %vm542 = vcmp.eq.f32.partialorder %v539, inf
    %v543 = vsel %vm542, %v539, %v541
    %vm544 = vcmp.eq.f32.partialorder %v539, 0.0
    %v545 = vand.u32 %v539, 2147483648
    %v546 = vsel %vm544, %v545, %v543
    %v547 = vadd.f32 %v546, 0.0
    %v549 = vsel %vm106, %v485, 0
    %551 = vmatprep.subr.mxu0 0.0
    %552 = vmatpush1.msra.mxu0 %v353
    %553 = vmatprep.subr.mxu0 0.0
    %554 = vmatpush1.msra.mxu0 0.0
    %555 = vmatprep.subr.mxu0 0.0
    %556 = vmatpush1.msra.mxu0 0.0
    %557 = vmatprep.subr.mxu0 0.0
    %558 = vmatpush1.msra.mxu0 0.0
    %559 = vmatprep.subr.mxu0 0.0
    %560 = vmatpush1.msra.mxu0 0.0
    %561 = vmatprep.subr.mxu0 0.0
    %562 = vmatpush1.msra.mxu0 0.0
    %563 = vmatprep.subr.mxu0 0.0
    %564 = vmatpush1.msra.mxu0 0.0
    %565 = vmatprep.subr.mxu0 0.0
    %566 = vmatpush1.msra.mxu0 0.0
    %567 = vmatprep.subr.mxu0 0.0
    %568 = vmatpush1.msra.mxu0 0.0
    %569 = vmatprep.subr.mxu0 0.0
    %570 = vmatpush1.msra.mxu0 0.0
    %571 = vmatprep.subr.mxu0 0.0
    %572 = vmatpush1.msra.mxu0 0.0
    %573 = vmatprep.subr.mxu0 0.0
    %574 = vmatpush1.msra.mxu0 0.0
    %575 = vmatprep.subr.mxu0 0.0
    %576 = vmatpush1.msra.mxu0 0.0
    %577 = vmatprep.subr.mxu0 0.0
    %578 = vmatpush1.msra.mxu0 0.0
    %579 = vmatprep.subr.mxu0 0.0
    %580 = vmatpush1.msra.mxu0 0.0
    %581 = vmatprep.subr.mxu0 0.0
    %582 = vmatpush1.msra.mxu0 0.0
    %583 = vmatprep.subr.mxu0 0.0
    %584 = vmatpush1.msra.mxu0 0.0
    %585 = vmatprep.subr.mxu0 0.0
    %586 = vmatpush1.msra.mxu0 0.0
    %587 = vmatprep.subr.mxu0 0.0
    %588 = vmatpush1.msra.mxu0 0.0
    %589 = vmatprep.subr.mxu0 0.0
    %590 = vmatpush1.msra.mxu0 0.0
    %591 = vmatprep.subr.mxu0 0.0
    %592 = vmatpush1.msra.mxu0 0.0
    %593 = vmatprep.subr.mxu0 0.0
    %594 = vmatpush1.msra.mxu0 0.0
    %595 = vmatprep.subr.mxu0 0.0
    %596 = vmatpush1.msra.mxu0 0.0
    %597 = vmatprep.subr.mxu0 0.0
    %598 = vmatpush1.msra.mxu0 0.0
    %599 = vmatprep.subr.mxu0 0.0
    %600 = vmatpush1.msra.mxu0 0.0
    %601 = vmatprep.subr.mxu0 0.0
    %602 = vmatpush1.msra.mxu0 0.0
    %603 = vmatprep.subr.mxu0 0.0
    %604 = vmatpush1.msra.mxu0 0.0
    %605 = vmatprep.subr.mxu0 0.0
    %606 = vmatpush1.msra.mxu0 0.0
    %607 = vmatprep.subr.mxu0 0.0
    %608 = vmatpush1.msra.mxu0 0.0
    %609 = vmatprep.subr.mxu0 0.0
    %610 = vmatpush1.msra.mxu0 0.0
    %611 = vmatprep.subr.mxu0 0.0
    %612 = vmatpush1.msra.mxu0 0.0
    %613 = vmatprep.subr.mxu0 0.0
    %614 = vmatpush1.msra.mxu0 0.0
    %615 = vmatprep.mubr.f32.mxu0 0.0
    %616 = vmatmul.mubr.f32.gmra.mrb[0].mxu0 %v549
    %v617 = vpop.f32.mrb[0].mxu0
    %v618 = vadd.f32 0.0, %v617
    %v619 = vpop.f32.mrb[0].mxu0
    %620 = vdwg.mxu0
    %v621 = vmul.f32 %v618, 0.2
    %v622 = vmax.f32 %v618, %v621
    %623 = vst.msk [vmem:[#allocation2] sm:$0xff] %vm182, %v622
    %v624 = vld [vmem:[%s184] sm:$0xff]
    %v625 = vadd.f32 %v624, %v351
    %s626 = scalar_lea.vmem %s2, 8
    %v627 = vld [vmem:[%s626] sm:$0xff]
    %629 = vset.pattern.permute.xlu0 0
    %630 = vperm.xlu0 %629, %v627
    %v631 = vpop.permute.xlu0 %630
    %v634 = vsel %vm182, %v625, 0
    %636 = vmatprep.subr.mxu0 0.0
    %637 = vmatpush1.xpose.msra.mxu0 %v634
    %638 = vmatprep.subr.mxu0 0.0
    %639 = vmatpush1.xpose.msra.mxu0 0.0
    %640 = vmatprep.subr.mxu0 0.0
    %641 = vmatpush1.xpose.msra.mxu0 0.0
    %642 = vmatprep.subr.mxu0 0.0
    %643 = vmatpush1.xpose.msra.mxu0 0.0
    %644 = vmatprep.subr.mxu0 0.0
    %645 = vmatpush1.xpose.msra.mxu0 0.0
    %646 = vmatprep.subr.mxu0 0.0
    %647 = vmatpush1.xpose.msra.mxu0 0.0
    %648 = vmatprep.subr.mxu0 0.0
    %649 = vmatpush1.xpose.msra.mxu0 0.0
    %650 = vmatprep.subr.mxu0 0.0
    %651 = vmatpush1.xpose.msra.mxu0 0.0
    %652 = vmatprep.subr.mxu0 0.0
    %653 = vmatpush1.xpose.msra.mxu0 0.0
    %654 = vmatprep.subr.mxu0 0.0
    %655 = vmatpush1.xpose.msra.mxu0 0.0
    %656 = vmatprep.subr.mxu0 0.0
    %657 = vmatpush1.xpose.msra.mxu0 0.0
    %658 = vmatprep.subr.mxu0 0.0
    %659 = vmatpush1.xpose.msra.mxu0 0.0
    %660 = vmatprep.subr.mxu0 0.0
    %661 = vmatpush1.xpose.msra.mxu0 0.0
    %662 = vmatprep.subr.mxu0 0.0
    %663 = vmatpush1.xpose.msra.mxu0 0.0
    %664 = vmatprep.subr.mxu0 0.0
    %665 = vmatpush1.xpose.msra.mxu0 0.0
    %666 = vmatprep.subr.mxu0 0.0
    %667 = vmatpush1.xpose.msra.mxu0 0.0
    %668 = vmatprep.subr.mxu0 0.0
    %669 = vmatpush1.xpose.msra.mxu0 0.0
    %670 = vmatprep.subr.mxu0 0.0
    %671 = vmatpush1.xpose.msra.mxu0 0.0
    %672 = vmatprep.subr.mxu0 0.0
    %673 = vmatpush1.xpose.msra.mxu0 0.0
    %674 = vmatprep.subr.mxu0 0.0
    %675 = vmatpush1.xpose.msra.mxu0 0.0
    %676 = vmatprep.subr.mxu0 0.0
    %677 = vmatpush1.xpose.msra.mxu0 0.0
    %678 = vmatprep.subr.mxu0 0.0
    %679 = vmatpush1.xpose.msra.mxu0 0.0
    %680 = vmatprep.subr.mxu0 0.0
    %681 = vmatpush1.xpose.msra.mxu0 0.0
    %682 = vmatprep.subr.mxu0 0.0
    %683 = vmatpush1.xpose.msra.mxu0 0.0
    %684 = vmatprep.subr.mxu0 0.0
    %685 = vmatpush1.xpose.msra.mxu0 0.0
    %686 = vmatprep.subr.mxu0 0.0
    %687 = vmatpush1.xpose.msra.mxu0 0.0
    %688 = vmatprep.subr.mxu0 0.0
    %689 = vmatpush1.xpose.msra.mxu0 0.0
    %690 = vmatprep.subr.mxu0 0.0
    %691 = vmatpush1.xpose.msra.mxu0 0.0
    %692 = vmatprep.subr.mxu0 0.0
    %693 = vmatpush1.xpose.msra.mxu0 0.0
    %694 = vmatprep.subr.mxu0 0.0
    %695 = vmatpush1.xpose.msra.mxu0 0.0
    %696 = vmatprep.subr.mxu0 0.0
    %697 = vmatpush1.xpose.msra.mxu0 0.0
    %698 = vmatprep.subr.mxu0 0.0
    %699 = vmatpush1.xpose.msra.mxu0 0.0
    %700 = vmatprep.mubr.f32.mxu0 0.0
    %701 = vmatmul.mubr.f32.gmra.mrb[0].mxu0 %v361
    %v702 = vpop.f32.mrb[0].mxu0
    %v703 = vadd.f32 %v631, %v702
    %v704 = vpop.f32.mrb[0].mxu0
    %705 = vdwg.mxu0
    %v706 = vxor.u32 %v703, 2147483648
    %v707 = vmul.f32 %v706, 1.442695
    %v708 = vpow.pop %v707
    %v709 = vadd.f32 %v708, 1.0
    %v710 = vrcp.pop %v709
    %v711 = vmul.f32 1.0, %v710
    %v712 = vsel %vm106, %v711, 0.0
    %713 = vadd.xlane.f32.xlu0 %v712
    %v714 = vpop.xlane.xlu0 %713
    %v715 = vrsqrt.pop %v714
    %v716 = vmul.f32 %v715, 0.0625
    %v717 = vmul.f32 %v716, %v711
    %718 = vxpose.xlu0.b32.start [1/16] %v715, 128
    %719 = vxpose.xlu0.b32.cont [2/16] 0.0, 128
    %720 = vxpose.xlu0.b32.cont [3/16] 0.0, 128
    %721 = vxpose.xlu0.b32.cont [4/16] 0.0, 128
    %722 = vxpose.xlu0.b32.cont [5/16] 0.0, 128
    %723 = vxpose.xlu0.b32.cont [6/16] 0.0, 128
    %724 = vxpose.xlu0.b32.cont [7/16] 0.0, 128
    %725 = vxpose.xlu0.b32.cont [8/16] 0.0, 128
    %726 = vxpose.xlu0.b32.cont [9/16] 0.0, 128
    %727 = vxpose.xlu0.b32.cont [10/16] 0.0, 128
    %728 = vxpose.xlu0.b32.cont [11/16] 0.0, 128
    %729 = vxpose.xlu0.b32.cont [12/16] 0.0, 128
    %730 = vxpose.xlu0.b32.cont [13/16] 0.0, 128
    %731 = vxpose.xlu0.b32.cont [14/16] 0.0, 128
    %732 = vxpose.xlu0.b32.cont [15/16] 0.0, 128
    %733 = vxpose.xlu0.b32.end [16/16] 0.0, 128
    %v734 = vpop.trf.xlu0
    %v735 = vpop.trf.xlu0
    %v736 = vpop.trf.xlu0
    %v737 = vpop.trf.xlu0
    %v738 = vpop.trf.xlu0
    %v739 = vpop.trf.xlu0
    %v740 = vpop.trf.xlu0
    %v741 = vpop.trf.xlu0
    %v742 = vpop.trf.xlu0
    %v743 = vpop.trf.xlu0
    %v744 = vpop.trf.xlu0
    %v745 = vpop.trf.xlu0
    %v746 = vpop.trf.xlu0
    %v747 = vpop.trf.xlu0
    %v748 = vpop.trf.xlu0
    %v749 = vpop.trf.xlu0
    %v750 = vlaneseq
    %v751 = vshrl.u32 %v750, 7
    %v752 = vsub.s32 0, %v751
    %v753 = vrot.slane %v734, %v752
    %v754 = vmul.f32 %v717, %v753
    %v755 = vadd.f32 %v754, %v79
    %756 = vxpose.xlu0.b32.start [1/16] %v104, 128
    %757 = vxpose.xlu0.b32.cont [2/16] 0.0, 128
    %758 = vxpose.xlu0.b32.cont [3/16] 0.0, 128
    %759 = vxpose.xlu0.b32.cont [4/16] 0.0, 128
    %760 = vxpose.xlu0.b32.cont [5/16] 0.0, 128
    %761 = vxpose.xlu0.b32.cont [6/16] 0.0, 128
    %762 = vxpose.xlu0.b32.cont [7/16] 0.0, 128
    %763 = vxpose.xlu0.b32.cont [8/16] 0.0, 128
    %764 = vxpose.xlu0.b32.cont [9/16] 0.0, 128
    %765 = vxpose.xlu0.b32.cont [10/16] 0.0, 128
    %766 = vxpose.xlu0.b32.cont [11/16] 0.0, 128
    %767 = vxpose.xlu0.b32.cont [12/16] 0.0, 128
    %768 = vxpose.xlu0.b32.cont [13/16] 0.0, 128
    %769 = vxpose.xlu0.b32.cont [14/16] 0.0, 128
    %770 = vxpose.xlu0.b32.cont [15/16] 0.0, 128
    %771 = vxpose.xlu0.b32.end [16/16] 0.0, 128
    %v772 = vpop.trf.xlu0
    %v773 = vpop.trf.xlu0
    %v774 = vpop.trf.xlu0
    %v775 = vpop.trf.xlu0
    %v776 = vpop.trf.xlu0
    %v777 = vpop.trf.xlu0
    %v778 = vpop.trf.xlu0
    %v779 = vpop.trf.xlu0
    %v780 = vpop.trf.xlu0
    %v781 = vpop.trf.xlu0
    %v782 = vpop.trf.xlu0
    %v783 = vpop.trf.xlu0
    %v784 = vpop.trf.xlu0
    %v785 = vpop.trf.xlu0
    %v786 = vpop.trf.xlu0
    %v787 = vpop.trf.xlu0
    %v788 = vlaneseq
    %v789 = vshrl.u32 %v788, 7
    %v790 = vsub.s32 0, %v789
    %v791 = vrot.slane %v772, %v790
    %v792 = vmul.f32 %v755, %v791
    %v793 = vsel %vm106, %v792, 0.0
    %794 = vadd.xlane.f32.xlu0 %v793
    %v795 = vpop.xlane.xlu0 %794
    %v796 = vsub.f32 %v104, %v795
    %v797 = vmul.f32 %v796, %v796
    %v798 = vsel %vm528, %v797, 0.0
    %799 = vadd.xlane.f32.xlu0 %v798
    %v800 = vpop.xlane.xlu0 %799
    %v801 = vrot.slane %v800, 4
    %v802 = vadd.f32 %v800, %v801
    %v803 = vrot.slane %v802, 2
    %v804 = vadd.f32 %v802, %v803
    %v805 = vrot.slane %v804, 1
    %v806 = vadd.f32 %v804, %v805
    %s807 = vtos %v806
    %v808 = vstv %s807
    %v809 = vrsqrt.pop %v808
    %v810 = vmul.f32 %v808, %v809
    %vm811 = vcmp.eq.f32.partialorder %v808, inf
    %v812 = vsel %vm811, %v808, %v810
    %vm813 = vcmp.eq.f32.partialorder %v808, 0.0
    %v814 = vand.u32 %v808, 2147483648
    %v815 = vsel %vm813, %v814, %v812
    %v816 = vadd.f32 %v547, %v815
    %v818 = vsel %vm106, %v755, 0
    %820 = vmatprep.subr.mxu0 0.0
    %821 = vmatpush1.msra.mxu0 %v625
    %822 = vmatprep.subr.mxu0 0.0
    %823 = vmatpush1.msra.mxu0 0.0
    %824 = vmatprep.subr.mxu0 0.0
    %825 = vmatpush1.msra.mxu0 0.0
    %826 = vmatprep.subr.mxu0 0.0
    %827 = vmatpush1.msra.mxu0 0.0
    %828 = vmatprep.subr.mxu0 0.0
    %829 = vmatpush1.msra.mxu0 0.0
    %830 = vmatprep.subr.mxu0 0.0
    %831 = vmatpush1.msra.mxu0 0.0
    %832 = vmatprep.subr.mxu0 0.0
    %833 = vmatpush1.msra.mxu0 0.0
    %834 = vmatprep.subr.mxu0 0.0
    %835 = vmatpush1.msra.mxu0 0.0
    %836 = vmatprep.subr.mxu0 0.0
    %837 = vmatpush1.msra.mxu0 0.0
    %838 = vmatprep.subr.mxu0 0.0
    %839 = vmatpush1.msra.mxu0 0.0
    %840 = vmatprep.subr.mxu0 0.0
    %841 = vmatpush1.msra.mxu0 0.0
    %842 = vmatprep.subr.mxu0 0.0
    %843 = vmatpush1.msra.mxu0 0.0
    %844 = vmatprep.subr.mxu0 0.0
    %845 = vmatpush1.msra.mxu0 0.0
    %846 = vmatprep.subr.mxu0 0.0
    %847 = vmatpush1.msra.mxu0 0.0
    %848 = vmatprep.subr.mxu0 0.0
    %849 = vmatpush1.msra.mxu0 0.0
    %850 = vmatprep.subr.mxu0 0.0
    %851 = vmatpush1.msra.mxu0 0.0
    %852 = vmatprep.subr.mxu0 0.0
    %853 = vmatpush1.msra.mxu0 0.0
    %854 = vmatprep.subr.mxu0 0.0
    %855 = vmatpush1.msra.mxu0 0.0
    %856 = vmatprep.subr.mxu0 0.0
    %857 = vmatpush1.msra.mxu0 0.0
    %858 = vmatprep.subr.mxu0 0.0
    %859 = vmatpush1.msra.mxu0 0.0
    %860 = vmatprep.subr.mxu0 0.0
    %861 = vmatpush1.msra.mxu0 0.0
    %862 = vmatprep.subr.mxu0 0.0
    %863 = vmatpush1.msra.mxu0 0.0
    %864 = vmatprep.subr.mxu0 0.0
    %865 = vmatpush1.msra.mxu0 0.0
    %866 = vmatprep.subr.mxu0 0.0
    %867 = vmatpush1.msra.mxu0 0.0
    %868 = vmatprep.subr.mxu0 0.0
    %869 = vmatpush1.msra.mxu0 0.0
    %870 = vmatprep.subr.mxu0 0.0
    %871 = vmatpush1.msra.mxu0 0.0
    %872 = vmatprep.subr.mxu0 0.0
    %873 = vmatpush1.msra.mxu0 0.0
    %874 = vmatprep.subr.mxu0 0.0
    %875 = vmatpush1.msra.mxu0 0.0
    %876 = vmatprep.subr.mxu0 0.0
    %877 = vmatpush1.msra.mxu0 0.0
    %878 = vmatprep.subr.mxu0 0.0
    %879 = vmatpush1.msra.mxu0 0.0
    %880 = vmatprep.subr.mxu0 0.0
    %881 = vmatpush1.msra.mxu0 0.0
    %882 = vmatprep.subr.mxu0 0.0
    %883 = vmatpush1.msra.mxu0 0.0
    %884 = vmatprep.mubr.f32.mxu0 0.0
    %885 = vmatmul.mubr.f32.gmra.mrb[0].mxu0 %v818
    %v886 = vpop.f32.mrb[0].mxu0
    %v887 = vadd.f32 0.0, %v886
    %v888 = vpop.f32.mrb[0].mxu0
    %889 = vdwg.mxu0
    %v890 = vmul.f32 %v887, 0.2
    %v891 = vmax.f32 %v887, %v890
    %892 = vst.msk [vmem:[#allocation2 + $0x8] sm:$0xff] %vm182, %v891
    %v893 = vld [vmem:[#allocation2] sm:$0xff]
    %v894 = vld [vmem:[#allocation2 + $0x8] sm:$0xff]
    %v896 = vlaneseq
    %v897 = vshrl.u32 %v896, 7
    %v898 = vsub.s32 0, %v897
    %v899 = vrot.slane %v90, %v898
    %v902 = vsel %vm182, %v893, 0
    %v905 = vsel %vm182, %v894, 0
    %907 = vmatprep.subr.mxu0 0.0
    %908 = vmatpush1.msra.mxu0 %v86
    %909 = vmatprep.subr.mxu0 0.0
    %910 = vmatpush1.msra.mxu0 %v87
    %911 = vmatprep.subr.mxu0 0.0
    %912 = vmatpush1.msra.mxu0 %v88
    %913 = vmatprep.subr.mxu0 0.0
    %914 = vmatpush1.msra.mxu0 %v89
    %915 = vmatprep.subr.mxu0 0.0
    %916 = vmatpush1.msra.mxu0 0.0
    %917 = vmatprep.subr.mxu0 0.0
    %918 = vmatpush1.msra.mxu0 0.0
    %919 = vmatprep.subr.mxu0 0.0
    %920 = vmatpush1.msra.mxu0 0.0
    %921 = vmatprep.subr.mxu0 0.0
    %922 = vmatpush1.msra.mxu0 0.0
    %923 = vmatprep.subr.mxu0 0.0
    %924 = vmatpush1.msra.mxu0 0.0
    %925 = vmatprep.subr.mxu0 0.0
    %926 = vmatpush1.msra.mxu0 0.0
    %927 = vmatprep.subr.mxu0 0.0
    %928 = vmatpush1.msra.mxu0 0.0
    %929 = vmatprep.subr.mxu0 0.0
    %930 = vmatpush1.msra.mxu0 0.0
    %931 = vmatprep.subr.mxu0 0.0
    %932 = vmatpush1.msra.mxu0 0.0
    %933 = vmatprep.subr.mxu0 0.0
    %934 = vmatpush1.msra.mxu0 0.0
    %935 = vmatprep.subr.mxu0 0.0
    %936 = vmatpush1.msra.mxu0 0.0
    %937 = vmatprep.subr.mxu0 0.0
    %938 = vmatpush1.msra.mxu0 0.0
    %939 = vmatprep.subr.mxu0 0.0
    %940 = vmatpush1.msra.mxu0 0.0
    %941 = vmatprep.subr.mxu0 0.0
    %942 = vmatpush1.msra.mxu0 0.0
    %943 = vmatprep.subr.mxu0 0.0
    %944 = vmatpush1.msra.mxu0 0.0
    %945 = vmatprep.subr.mxu0 0.0
    %946 = vmatpush1.msra.mxu0 0.0
    %947 = vmatprep.subr.mxu0 0.0
    %948 = vmatpush1.msra.mxu0 0.0
    %949 = vmatprep.subr.mxu0 0.0
    %950 = vmatpush1.msra.mxu0 0.0
    %951 = vmatprep.subr.mxu0 0.0
    %952 = vmatpush1.msra.mxu0 0.0
    %953 = vmatprep.subr.mxu0 0.0
    %954 = vmatpush1.msra.mxu0 0.0
    %955 = vmatprep.subr.mxu0 0.0
    %956 = vmatpush1.msra.mxu0 0.0
    %957 = vmatprep.subr.mxu0 0.0
    %958 = vmatpush1.msra.mxu0 0.0
    %959 = vmatprep.subr.mxu0 0.0
    %960 = vmatpush1.msra.mxu0 0.0
    %961 = vmatprep.subr.mxu0 0.0
    %962 = vmatpush1.msra.mxu0 0.0
    %963 = vmatprep.subr.mxu0 0.0
    %964 = vmatpush1.msra.mxu0 0.0
    %965 = vmatprep.subr.mxu0 0.0
    %966 = vmatpush1.msra.mxu0 0.0
    %967 = vmatprep.subr.mxu0 0.0
    %968 = vmatpush1.msra.mxu0 0.0
    %969 = vmatprep.subr.mxu0 0.0
    %970 = vmatpush1.msra.mxu0 0.0
    %971 = vmatprep.mubr.f32.mxu0 0.0
    %972 = vmatmul.mubr.f32.gmra.mrb[0].mxu0 %v902
    %v973 = vpop.f32.mrb[0].mxu0
    %v974 = vadd.f32 %v899, %v973
    %v975 = vpop.f32.mrb[0].mxu0
    %976 = vmatprep.mubr.f32.mxu0 0.0
    %977 = vmatmul.mubr.f32.gmra.mrb[0].mxu0 %v905
    %v978 = vpop.f32.mrb[0].mxu0
    %v979 = vadd.f32 %v899, %v978
    %v980 = vpop.f32.mrb[0].mxu0
    %981 = vdwg.mxu0
    %v982 = vmul.f32 %v974, 0.2
    %v983 = vmul.f32 %v979, 0.2
    %v984 = vmax.f32 %v974, %v982
    %v985 = vmax.f32 %v979, %v983
    %986 = vst.msk [vmem:[#allocation9] sm:$0xff] %vm182, %v984
    %s987 = scalar_lea.vmem [#allocation9], 8
    %988 = vst.msk [vmem:[%s987] sm:$0xff] %vm182, %v985
    %vm989 = vcmask 0
    %990 = vst.msk [vmem:[#allocation10] sm:$0x1] %vm989, %v816
    // Predicated region
    $region54: #{dgcn_forward.1} parent=1 // pred_check
      _
    $region55: #{dgcn_forward.1} parent=1 // pred_check_branch
      %992 = sbr.rel (0) target = $region57
    $region56: #{dgcn_forward.1} parent=1 // pred_region
      %s994 = ssub.s32 256, 256
      %995 = vsyncadd [#allocation5], %s994
      %s996 = sshll.u32 [#allocation9], 4
      %s997 = int_to_ptr.vmem [resolvable:$true] %s996
      %1002 = dma.vmem_to_hbm [thread:$0]  %s997, 256, %s10, [#allocation5], 128, 128, 8
    $region57: #{dgcn_forward.1} parent=1 // pred_fallthru
      _
    // Predicated region
    $region58: #{dgcn_forward.1} parent=1 // pred_check
      _
    $region59: #{dgcn_forward.1} parent=1 // pred_check_branch
      %1004 = sbr.rel (0) target = $region61
    $region60: #{dgcn_forward.1} parent=1 // pred_region
      %s1006 = ssub.s32 16, 16
      %1007 = vsyncadd [#allocation11], %s1006
      %s1009 = sshll.u32 [#allocation10], 4
      %s1010 = int_to_ptr.vmem [resolvable:$true] %s1009
      %1012 = dma.vmem_to_hbm [thread:$0]  %s1010, 16, %s11, [#allocation11]
    $region61: #{dgcn_forward.1} parent=1 // pred_fallthru
      _
    // Predicated region
    $region62: #{dgcn_forward.1} parent=1 // pred_check
      _
    $region63: #{dgcn_forward.1} parent=1 // pred_check_branch
      %1014 = sbr.rel (0) target = $region65
    $region64: #{dgcn_forward.1} parent=1 // pred_region
      %1015 = dma.done [#allocation5], 256
    $region65: #{dgcn_forward.1} parent=1 // pred_fallthru
      _
    // Predicated region
    $region66: #{dgcn_forward.1} parent=1 // pred_check
      _
    $region67: #{dgcn_forward.1} parent=1 // pred_check_branch
      %1017 = sbr.rel (0) target = $region69
    $region68: #{dgcn_forward.1} parent=1 // pred_region
      %1018 = dma.done [#allocation11], 16
    $region69: #{dgcn_forward.1} parent=1 // pred_fallthru
      _
    %1019 = vsyncpa [#allocation4], 1
    %1020 = vsyncpa [#allocation7], 1
    %1021 = vsyncpa [#allocation5], 1
    %1022 = vsyncpa [#allocation11], 1

</llo_original>
